<compile_context>
chip_gen: v6e
topology: v6e:2x2x1
jax: 0.10.0
libtpu: 0.0.40
codegen_flags: <defaults>
</compile_context>

<pallas_src>
import jax
import jax.numpy as jnp
from jax.experimental import pallas as pl
from jax.experimental.pallas import tpu as pltpu

HIDDEN = 128                 # MLP width, matches nn.Linear(n_obs,128)/(128,128)
LANE = 128                   # TPU lane width; layer-3 output padded to this
K1P = 16                     # layer-1 K padded to one packed bf16 sublane group
W_ROWS = K1P + 2 * HIDDEN    # rows of the packed bf16 weight slab (272)
B_ROWS = 8                   # bias slab rows = one native (8,128) f32 tile

ACTING_TB_MAX = 64           # single-tile threshold for tiny acting batches
TRAIN_TB_CAP = 512           # max rows per batch tile for replay batches


def _round_up(x, m):
    return ((x + m - 1) // m) * m


def dqn_kernel(x_ref, w_ref, b_ref, o_ref, xp_ref):
    """x_ref: (TB, n_obs) f32.  w_ref: (272, 128) bf16 slab [w1_pad; w2; w3_pad].
    b_ref: (8, 128) f32 slab [b1; b2; b3_pad; 0...].  o_ref: (TB, 128) f32.
    xp_ref: (TB, K1P) f32 scratch holding the zero-padded layer-1 LHS."""
    n_obs = x_ref.shape[1]

    # Stage x into a K1P-wide zero-padded buffer so layer 1 is one native
    # K=16 bf16 MXU matmul (padding columns hit zero weight rows; they are
    # zeroed so undefined data in partial blocks can never poison a row).
    xp_ref[...] = jnp.zeros_like(xp_ref)
    xp_ref[:, 0:n_obs] = x_ref[...]
    x1 = xp_ref[...].astype(jnp.bfloat16)

    # ---- Layer 1 (MXU), f32 accumulation; bias + relu on the VPU ----
    h1 = jnp.dot(x1, w_ref[0:K1P, :], preferred_element_type=jnp.float32)
    h1 = jnp.maximum(h1 + b_ref[0:1, :], 0.0).astype(jnp.bfloat16)

    # ---- Layer 2 (MXU) ----
    h2 = jnp.dot(h1, w_ref[K1P:K1P + HIDDEN, :],
                 preferred_element_type=jnp.float32)
    h2 = jnp.maximum(h2 + b_ref[1:2, :], 0.0).astype(jnp.bfloat16)

    # ---- Layer 3 (MXU); output block is lane-dense (TB, 128) ----
    q = jnp.dot(h2, w_ref[K1P + HIDDEN:W_ROWS, :],
                preferred_element_type=jnp.float32)
    o_ref[...] = (q + b_ref[2:3, :]).astype(o_ref.dtype)


def prepare_params(params, n_actions):
    """One-time packing into two kernel-resident slabs (2 DMAs/call, not 6):
    * bf16 weight slab (272,128): rows [0:16) = w1 zero-padded in K,
      rows [16:144) = w2, rows [144:272) = w3 zero-padded to 128 out lanes.
    * f32 bias slab (8,128): rows 0/1/2 = b1 / b2 / b3 (lane-padded)."""
    w1, b1, w2, b2, w3, b3 = params
    n_obs = w1.shape[0]
    assert n_obs <= K1P and w2.shape == (HIDDEN, HIDDEN)
    w_slab = jnp.zeros((W_ROWS, HIDDEN), jnp.float32)
    w_slab = w_slab.at[:n_obs, :].set(w1)
    w_slab = w_slab.at[K1P:K1P + HIDDEN, :].set(w2)
    w_slab = w_slab.at[K1P + HIDDEN:, :n_actions].set(w3)
    b_slab = jnp.zeros((B_ROWS, HIDDEN), jnp.float32)
    b_slab = b_slab.at[0, :].set(b1.reshape(-1))
    b_slab = b_slab.at[1, :].set(b2.reshape(-1))
    b_slab = b_slab.at[2, :n_actions].set(b3.reshape(-1))
    return w_slab.astype(jnp.bfloat16), b_slab


def dqn_forward(x, prepared_params, n_actions):
    """x: (B, n_obs) float32. Returns Q-values (B, n_actions) float32."""
    w_slab, b_slab = prepared_params
    B, n_obs = x.shape
    assert n_obs <= K1P

    # Batch tiling with NO wrapper padding (partial last block is masked by
    # Pallas; rows are independent through relu/matmul so undefined padding
    # rows are harmless and never written back). Acting batches -> 1 tile;
    # training batches -> >=2 tiles of <=512 rows (v7x megacore + fewer
    # grid-step / weight-push overheads than 256-row tiles).
    b8 = _round_up(B, 8)
    if b8 <= ACTING_TB_MAX:
        tb = b8
    else:
        tb = min(TRAIN_TB_CAP, _round_up(pl.cdiv(b8, 2), 8))
    grid = (pl.cdiv(B, tb),)

    cost = pl.CostEstimate(
        flops=2 * B * HIDDEN * (K1P + HIDDEN + LANE),
        transcendentals=0,
        bytes_accessed=(x.size * 4 + w_slab.size * 2 + b_slab.size * 4
                        + B * LANE * 4),
    )

    out = pl.pallas_call(
        dqn_kernel,
        out_shape=jax.ShapeDtypeStruct((B, LANE), jnp.float32),
        grid=grid,
        in_specs=[
            pl.BlockSpec((tb, n_obs), lambda i: (i, 0)),       # x (batch tiled)
            pl.BlockSpec((W_ROWS, HIDDEN), lambda i: (0, 0)),  # weight slab (resident)
            pl.BlockSpec((B_ROWS, HIDDEN), lambda i: (0, 0)),  # bias slab (resident)
        ],
        out_specs=pl.BlockSpec((tb, LANE), lambda i: (i, 0)),
        scratch_shapes=[pltpu.VMEM((tb, K1P), jnp.float32)],
        compiler_params=pltpu.CompilerParams(
            # Independent batch tiles: lets v7x's 2 TensorCores split the
            # grid; no effect on v5e/v6e (single TC).
            dimension_semantics=("parallel",),
            # True footprint is ~2 MiB even at tb=512; keep the declared
            # scoped VMEM tight so XLA retains co-scheduling headroom.
            vmem_limit_bytes=8 * 1024 * 1024,
        ),
        cost_estimate=cost,
    )(x, w_slab, b_slab)

    # Strip the layer-3 lane padding (batch dim is already exact).
    return out[:, :n_actions]


def init_params(key, n_observations, n_actions):
    """Mimics torch.nn.Linear default init: U(-1/sqrt(fan_in), 1/sqrt(fan_in)).
    Weights stored as (in_features, out_features)."""
    def linear(key, fan_in, fan_out):
        kw, kb = jax.random.split(key)
        bound = 1.0 / jnp.sqrt(jnp.float32(fan_in))
        w = jax.random.uniform(kw, (fan_in, fan_out), jnp.float32, -bound, bound)
        b = jax.random.uniform(kb, (1, fan_out), jnp.float32, -bound, bound)
        return w, b

    k1, k2, k3 = jax.random.split(key, 3)
    w1, b1 = linear(k1, n_observations, HIDDEN)
    w2, b2 = linear(k2, HIDDEN, HIDDEN)
    w3, b3 = linear(k3, HIDDEN, n_actions)
    return (w1, b1, w2, b2, w3, b3)


def dqn_reference_emulated(x, params):
    """Faithful emulation of the kernel numerics (bf16 matmul inputs, f32
    accumulation, f32 bias/relu) in plain JAX -> tight tolerance check."""
    w1, b1, w2, b2, w3, b3 = params
    hi = jax.lax.Precision.HIGHEST
    q = lambda a: a.astype(jnp.bfloat16).astype(jnp.float32)
    h1 = jnp.maximum(jnp.dot(q(x), q(w1), precision=hi) + b1, 0.0)
    h2 = jnp.maximum(jnp.dot(q(h1), q(w2), precision=hi) + b2, 0.0)
    return jnp.dot(q(h2), q(w3), precision=hi) + b3


def dqn_reference_f32(x, params):
    """True-f32 PyTorch-equivalent forward (quantization-error yardstick)."""
    w1, b1, w2, b2, w3, b3 = params
    hi = jax.lax.Precision.HIGHEST
    h1 = jnp.maximum(jnp.dot(x, w1, precision=hi) + b1, 0.0)
    h2 = jnp.maximum(jnp.dot(h1, w2, precision=hi) + b2, 0.0)
    return jnp.dot(h2, w3, precision=hi) + b3


if __name__ == "__main__":
    # CartPole-v1: 4 observations, 2 actions.
    n_observations = 4
    n_actions = 2

    key = jax.random.PRNGKey(0)
    kx, kt, kp = jax.random.split(key, 3)
    params = init_params(kp, n_observations, n_actions)
    prepared = prepare_params(params, n_actions)

    # --- Acting path: tiny batch, single tile, grid=(1,) ---
    x_act = jax.random.normal(kx, (8, n_observations), dtype=jnp.float32)
    q_act = jax.block_until_ready(dqn_forward(x_act, prepared, n_actions))
    assert q_act.shape == (8, n_actions), q_act.shape
    ref_act = dqn_reference_emulated(x_act, params)
    assert jnp.allclose(q_act, ref_act, atol=1e-3, rtol=1e-3), "acting mismatch"

    # --- Replay/training path: multi-tile grid with a partial last block ---
    x_train = jax.random.normal(kt, (200, n_observations), dtype=jnp.float32)
    q_train = jax.block_until_ready(dqn_forward(x_train, prepared, n_actions))
    assert q_train.shape == (200, n_actions), q_train.shape
    ref_train = dqn_reference_emulated(x_train, params)
    assert jnp.allclose(q_train, ref_train, atol=1e-3, rtol=1e-3), "train mismatch"

    # Loose sanity check against the true-f32 model (bounds the bf16
    # weight/activation quantization error the kernel intentionally accepts).
    ref_f32 = dqn_reference_f32(x_train, params)
    assert jnp.allclose(q_train, ref_f32, atol=1e-1), "bf16 quantization drift"

    print("KERNEL_OK")
</pallas_src>

<mosaic_0001>
module attributes {stable_mosaic.version = 11 : i64} {
  func.func @dqn_kernel(%arg0: i32, %arg1: memref<8x4xf32, #tpu.memory_space<vmem>>, %arg2: memref<272x128xbf16, #tpu.memory_space<vmem>>, %arg3: memref<8x128xf32, #tpu.memory_space<vmem>>, %arg4: memref<8x128xf32, #tpu.memory_space<vmem>>, %arg5: memref<8x16xf32, #tpu.memory_space<vmem>>) attributes {dimension_semantics = [#tpu.dimension_semantics<parallel>], iteration_bounds = array<i64: 1>, scalar_prefetch = 0 : i64, scratch_operands = 1 : i64, tpu.core_type = #tpu.core_type<tc>, window_params = [{transform_indices = @transform_0, window_bounds = array<i64: 8, 4>}, {pipeline_mode = #tpu.pipeline_mode<synchronous>, transform_indices = @transform_1, window_bounds = array<i64: 272, 128>}, {pipeline_mode = #tpu.pipeline_mode<synchronous>, transform_indices = @transform_2, window_bounds = array<i64: 8, 128>}, {transform_indices = @transform_3, window_bounds = array<i64: 8, 128>}]} {
    %cst = arith.constant 0.000000e+00 : f32
    %0 = vector.broadcast %cst : f32 to vector<8x16xf32>
    %c0 = arith.constant 0 : index
    %c0_0 = arith.constant 0 : index
    %1 = vector.load %arg5[%c0, %c0_0] : memref<8x16xf32, #tpu.memory_space<vmem>>, vector<8x16xf32>
    tpu.vector_store %arg5[%c0, %c0_0], %0 {strides = array<i32>} : memref<8x16xf32, #tpu.memory_space<vmem>>, vector<8x16xf32>,
    %c0_1 = arith.constant 0 : index
    %c0_2 = arith.constant 0 : index
    %2 = vector.load %arg1[%c0_1, %c0_2] : memref<8x4xf32, #tpu.memory_space<vmem>>, vector<8x4xf32>
    %c0_3 = arith.constant 0 : index
    %c0_4 = arith.constant 0 : index
    %3 = vector.load %arg5[%c0_3, %c0_4] : memref<8x16xf32, #tpu.memory_space<vmem>>, vector<8x4xf32>
    tpu.vector_store %arg5[%c0_3, %c0_4], %2 {strides = array<i32>} : memref<8x16xf32, #tpu.memory_space<vmem>>, vector<8x4xf32>,
    %c0_5 = arith.constant 0 : index
    %c0_6 = arith.constant 0 : index
    %4 = vector.load %arg5[%c0_5, %c0_6] : memref<8x16xf32, #tpu.memory_space<vmem>>, vector<8x16xf32>
    %5 = arith.truncf %4 : vector<8x16xf32> to vector<8x16xbf16>
    %c0_7 = arith.constant 0 : index
    %c0_8 = arith.constant 0 : index
    %6 = vector.load %arg2[%c0_7, %c0_8] : memref<272x128xbf16, #tpu.memory_space<vmem>>, vector<16x128xbf16>
    %cst_9 = arith.constant dense<0.000000e+00> : vector<8x128xf32>
    %7 = tpu.matmul %5, %6, %cst_9 {dimension_numbers = #tpu.dot_dimension_numbers<[1], [0], [0], [1], [0, 0, 1, 1], [], []>} : vector<8x16xbf16>, vector<16x128xbf16>, vector<8x128xf32> -> vector<8x128xf32>
    %c0_10 = arith.constant 0 : index
    %c0_11 = arith.constant 0 : index
    %8 = vector.load %arg3[%c0_10, %c0_11] : memref<8x128xf32, #tpu.memory_space<vmem>>, vector<1x128xf32>
    %9 = vector.broadcast %8 : vector<1x128xf32> to vector<8x128xf32>
    %10 = arith.addf %7, %9 : vector<8x128xf32>
    %cst_12 = arith.constant 0.000000e+00 : f32
    %11 = vector.broadcast %cst_12 : f32 to vector<8x128xf32>
    %12 = arith.maximumf %10, %11 : vector<8x128xf32>
    %13 = arith.truncf %12 : vector<8x128xf32> to vector<8x128xbf16>
    %c16 = arith.constant 16 : index
    %c0_13 = arith.constant 0 : index
    %14 = vector.load %arg2[%c16, %c0_13] : memref<272x128xbf16, #tpu.memory_space<vmem>>, vector<128x128xbf16>
    %cst_14 = arith.constant dense<0.000000e+00> : vector<8x128xf32>
    %15 = tpu.matmul %13, %14, %cst_14 {dimension_numbers = #tpu.dot_dimension_numbers<[1], [0], [0], [1], [0, 0, 1, 1], [], []>} : vector<8x128xbf16>, vector<128x128xbf16>, vector<8x128xf32> -> vector<8x128xf32>
    %c1 = arith.constant 1 : index
    %c0_15 = arith.constant 0 : index
    %16 = vector.load %arg3[%c1, %c0_15] : memref<8x128xf32, #tpu.memory_space<vmem>>, vector<1x128xf32>
    %17 = vector.broadcast %16 : vector<1x128xf32> to vector<8x128xf32>
    %18 = arith.addf %15, %17 : vector<8x128xf32>
    %cst_16 = arith.constant 0.000000e+00 : f32
    %19 = vector.broadcast %cst_16 : f32 to vector<8x128xf32>
    %20 = arith.maximumf %18, %19 : vector<8x128xf32>
    %21 = arith.truncf %20 : vector<8x128xf32> to vector<8x128xbf16>
    %c144 = arith.constant 144 : index
    %c0_17 = arith.constant 0 : index
    %22 = vector.load %arg2[%c144, %c0_17] : memref<272x128xbf16, #tpu.memory_space<vmem>>, vector<128x128xbf16>
    %cst_18 = arith.constant dense<0.000000e+00> : vector<8x128xf32>
    %23 = tpu.matmul %21, %22, %cst_18 {dimension_numbers = #tpu.dot_dimension_numbers<[1], [0], [0], [1], [0, 0, 1, 1], [], []>} : vector<8x128xbf16>, vector<128x128xbf16>, vector<8x128xf32> -> vector<8x128xf32>
    %c2 = arith.constant 2 : index
    %c0_19 = arith.constant 0 : index
    %24 = vector.load %arg3[%c2, %c0_19] : memref<8x128xf32, #tpu.memory_space<vmem>>, vector<1x128xf32>
    %25 = vector.broadcast %24 : vector<1x128xf32> to vector<8x128xf32>
    %26 = arith.addf %23, %25 : vector<8x128xf32>
    %c0_20 = arith.constant 0 : index
    %c0_21 = arith.constant 0 : index
    %27 = vector.load %arg4[%c0_20, %c0_21] : memref<8x128xf32, #tpu.memory_space<vmem>>, vector<8x128xf32>
    tpu.vector_store %arg4[%c0_20, %c0_21], %26 {strides = array<i32>} : memref<8x128xf32, #tpu.memory_space<vmem>>, vector<8x128xf32>,
    return
  }
  func.func @transform_0(%arg0: i32) -> (i32, i32) {
    %c0_i32 = arith.constant 0 : i32
    %c0_i32_0 = arith.constant 0 : i32
    return %arg0, %c0_i32 : i32, i32
  }
  func.func @transform_1(%arg0: i32) -> (i32, i32) {
    %c0_i32 = arith.constant 0 : i32
    %c0_i32_0 = arith.constant 0 : i32
    %c0_i32_1 = arith.constant 0 : i32
    return %c0_i32, %c0_i32_0 : i32, i32
  }
  func.func @transform_2(%arg0: i32) -> (i32, i32) {
    %c0_i32 = arith.constant 0 : i32
    %c0_i32_0 = arith.constant 0 : i32
    %c0_i32_1 = arith.constant 0 : i32
    return %c0_i32, %c0_i32_0 : i32, i32
  }
  func.func @transform_3(%arg0: i32) -> (i32, i32) {
    %c0_i32 = arith.constant 0 : i32
    %c0_i32_0 = arith.constant 0 : i32
    return %arg0, %c0_i32 : i32, i32
  }
}

</mosaic_0001>

<llo_original>
// kernel: tpu_custom_call.1
$region0: #{tpu_custom_call.1}
  #allocation0 [shape = 'u32[]', space=smem, size = 0x4, offset = 0x4, fixed_abs, tag = 'smem constant byte address 0x4 - core index']
  #allocation1 [shape = 'u32[144,128]{1,0:T(1,128)}', space=vmem, size = 0x12000, scoped, tag = 'internal scratch']
  #allocation2 [shape = 'f32[8,16]{1,0:T(8,128)}', space=vmem, size = 0x1000, scoped, tag = 'scratch operand']
  %s0 = inlined_call_operand.vmem [shape: f32[8,4], index: 0, kind: input, shape index: {}]
  %s1 = inlined_call_operand.hbm [shape: bf16[272,128], index: 1, kind: input, shape index: {}]
  %s2 = inlined_call_operand.vmem [shape: f32[8,128], index: 2, kind: input, shape index: {}]
  %s3 = inlined_call_operand.hbm [shape: f32[8,128], index: 3, kind: output, shape index: {}]
  %s4 = sld [smem:[#allocation0]]
  $region26: #{tpu_custom_call.1} parent=0
    _
  %s6 = ssub.s32 1, %s4
  %s7 = scalar_select 0, %s6, %s4
  $region1: #{tpu_custom_call.1} parent=0
    #allocation3 [shape = 'u8[69632]{0}', space=vmem, size = 0x11000, scoped, tag = 'input window, operand 1, single buffered']
    #allocation4 [shape = 's32[1]{0}', space=sflag, size = 0x4, scoped, tag = 'scoped memory for tpu_custom_call.1']
    #allocation5 [shape = 's32[1]{0}', space=sflag, size = 0x4, scoped, tag = 'scoped memory for tpu_custom_call.1']
    #allocation6 [shape = 'u8[4096]{0}', space=vmem, size = 0x1000, scoped, tag = 'output window, operand 0, single buffered']
    %8 = vsyncpa [#allocation4], 0
    %9 = vsyncpa [#allocation5], 0
    // Predicated region
    $region2: #{tpu_custom_call.1} parent=1 // pred_check
      _
    $region3: #{tpu_custom_call.1} parent=1 // pred_check_branch
      %11 = sbr.rel (0) target = $region5
    $region4: #{tpu_custom_call.1} parent=1 // pred_region
      _
    $region5: #{tpu_custom_call.1} parent=1 // pred_fallthru
      _
    // Predicated region
    $region6: #{tpu_custom_call.1} parent=1 // pred_check
      _
    $region7: #{tpu_custom_call.1} parent=1 // pred_check_branch
      %13 = sbr.rel (0) target = $region9
    $region8: #{tpu_custom_call.1} parent=1 // pred_region
      %s15 = ssub.s32 2176, 2176
      %16 = vsyncadd [#allocation4], %s15
      %s17 = sshll.u32 [#allocation3], 4
      %s18 = int_to_ptr.vmem [resolvable:$true] %s17
      %23 = dma.hbm_to_vmem [thread:$0]  %s1, 2176, %s18, [#allocation4], 64, 64, 4
    $region9: #{tpu_custom_call.1} parent=1 // pred_fallthru
      _
    // Predicated region
    $region10: #{tpu_custom_call.1} parent=1 // pred_check
      _
    $region11: #{tpu_custom_call.1} parent=1 // pred_check_branch
      %25 = sbr.rel (0) target = $region13
    $region12: #{tpu_custom_call.1} parent=1 // pred_region
      _
    $region13: #{tpu_custom_call.1} parent=1 // pred_fallthru
      _
    // Predicated region
    $region14: #{tpu_custom_call.1} parent=1 // pred_check
      _
    $region15: #{tpu_custom_call.1} parent=1 // pred_check_branch
      %27 = sbr.rel (0) target = $region17
    $region16: #{tpu_custom_call.1} parent=1 // pred_region
      %28 = dma.done [#allocation4], 2176
    $region17: #{tpu_custom_call.1} parent=1 // pred_fallthru
      _
    %vm30 = vcmask 130048
    %31 = vst.msk [vmem:[#allocation2] sm:$0xff] %vm30, 0.0
    %v32 = vld [vmem:[%s0] sm:$0xff]
    %vm33 = vcmask 31744
    %34 = vst.msk [vmem:[#allocation2] sm:$0xff] %vm33, %v32
    %v35 = vld [vmem:[#allocation2] sm:$0xff]
    %v36 = vpack.c.bf16 %v35, %v35
    %v37 = vld [vmem:[#allocation3] sm:$0xf]
    %v38 = vld [vmem:[#allocation3 + $0x4] sm:$0xf]
    %v39 = vld [vmem:[%s2] sm:$0x1]
    %v40 = vlaneseq
    %v41 = vshrl.u32 %v40, 7
    %v42 = vsub.s32 0, %v41
    %v43 = vrot.slane %v39, %v42
    %v46 = vunpack.c.l.b16 %v37
    %v47 = vunpack.c.l.b16 %v38
    %v48 = vpack.c.b16 %v47, %v46
    %v51 = vsel %vm30, %v36, 0
    %53 = vmatprep.subr.bf16.mxu0 0
    %54 = vmatpush1.bf16.msra.mxu0 0
    %55 = vmatprep.subr.bf16.mxu0 0
    %56 = vmatpush1.bf16.msra.mxu0 0
    %57 = vmatprep.subr.bf16.mxu0 0
    %58 = vmatpush1.bf16.msra.mxu0 0
    %59 = vmatprep.subr.bf16.mxu0 0
    %60 = vmatpush1.bf16.msra.mxu0 0
    %61 = vmatprep.subr.bf16.mxu0 0
    %62 = vmatpush1.bf16.msra.mxu0 0
    %63 = vmatprep.subr.bf16.mxu0 0
    %64 = vmatpush1.bf16.msra.mxu0 0
    %65 = vmatprep.subr.bf16.mxu0 0
    %66 = vmatpush1.bf16.msra.mxu0 0
    %67 = vmatprep.subr.bf16.mxu0 0
    %68 = vmatpush1.bf16.msra.mxu0 %v48
    %69 = vmatprep.subr.bf16.mxu0 0
    %70 = vmatpush2.bf16.msra.mxu0 0
    %71 = vmatprep.subr.bf16.mxu0 0
    %72 = vmatpush2.bf16.msra.mxu0 0
    %73 = vmatprep.subr.bf16.mxu0 0
    %74 = vmatpush2.bf16.msra.mxu0 0
    %75 = vmatprep.subr.bf16.mxu0 0
    %76 = vmatpush2.bf16.msra.mxu0 0
    %77 = vmatprep.subr.bf16.mxu0 0
    %78 = vmatpush2.bf16.msra.mxu0 0
    %79 = vmatprep.subr.bf16.mxu0 0
    %80 = vmatpush2.bf16.msra.mxu0 0
    %81 = vmatprep.subr.bf16.mxu0 0
    %82 = vmatpush2.bf16.msra.mxu0 0
    %83 = vmatprep.subr.bf16.mxu0 0
    %84 = vmatpush2.bf16.msra.mxu0 0
    %85 = vmatprep.mubr.bf16.mxu0 0
    %86 = vmatmul.mubr.bf16.gmra.mxu0 %v51
    %v87 = vpop.f32.mrf.mxu0
    %v88 = vadd.f32 %v43, %v87
    %v89 = vpop.f32.mrf.mxu0
    %v90 = vpop.f32.mrf.mxu0
    %v91 = vpop.f32.mrf.mxu0
    %92 = vdwg.mxu0
    %v93 = vmax.f32 %v88, 0.0
    %v94 = vpack.c.bf16 %v93, %v93
    %v95 = vld [vmem:[#allocation3 + $0x8] sm:$0xf]
    %v96 = vld [vmem:[#allocation3 + $0xc] sm:$0xf]
    %v97 = vld [vmem:[#allocation3 + $0x10] sm:$0xf]
    %v98 = vld [vmem:[#allocation3 + $0x14] sm:$0xf]
    %v99 = vld [vmem:[#allocation3 + $0x18] sm:$0xf]
    %v100 = vld [vmem:[#allocation3 + $0x1c] sm:$0xf]
    %v101 = vld [vmem:[#allocation3 + $0x20] sm:$0xf]
    %v102 = vld [vmem:[#allocation3 + $0x24] sm:$0xf]
    %v103 = vld [vmem:[#allocation3 + $0x28] sm:$0xf]
    %v104 = vld [vmem:[#allocation3 + $0x2c] sm:$0xf]
    %v105 = vld [vmem:[#allocation3 + $0x30] sm:$0xf]
    %v106 = vld [vmem:[#allocation3 + $0x34] sm:$0xf]
    %v107 = vld [vmem:[#allocation3 + $0x38] sm:$0xf]
    %v108 = vld [vmem:[#allocation3 + $0x3c] sm:$0xf]
    %v109 = vld [vmem:[#allocation3 + $0x40] sm:$0xf]
    %v110 = vld [vmem:[#allocation3 + $0x44] sm:$0xf]
    %v111 = vld [vmem:[%s2 + $0x1] sm:$0x1]
    %v112 = vlaneseq
    %v113 = vshrl.u32 %v112, 7
    %v114 = vsub.s32 0, %v113
    %v115 = vrot.slane %v111, %v114
    %v132 = vunpack.c.l.b16 %v95
    %v133 = vunpack.c.l.b16 %v96
    %v134 = vunpack.c.l.b16 %v97
    %v135 = vunpack.c.l.b16 %v98
    %v136 = vunpack.c.l.b16 %v99
    %v137 = vunpack.c.l.b16 %v100
    %v138 = vunpack.c.l.b16 %v101
    %v139 = vunpack.c.l.b16 %v102
    %v140 = vunpack.c.l.b16 %v103
    %v141 = vunpack.c.l.b16 %v104
    %v142 = vunpack.c.l.b16 %v105
    %v143 = vunpack.c.l.b16 %v106
    %v144 = vunpack.c.l.b16 %v107
    %v145 = vunpack.c.l.b16 %v108
    %v146 = vunpack.c.l.b16 %v109
    %v147 = vunpack.c.l.b16 %v110
    %v148 = vpack.c.b16 %v133, %v132
    %v149 = vpack.c.b16 %v135, %v134
    %v150 = vpack.c.b16 %v137, %v136
    %v151 = vpack.c.b16 %v139, %v138
    %v152 = vpack.c.b16 %v141, %v140
    %v153 = vpack.c.b16 %v143, %v142
    %v154 = vpack.c.b16 %v145, %v144
    %v155 = vpack.c.b16 %v147, %v146
    %164 = vmatprep.subr.bf16.mxu0 0
    %165 = vmatpush1.bf16.msra.mxu0 %v155
    %166 = vmatprep.subr.bf16.mxu0 0
    %167 = vmatpush1.bf16.msra.mxu0 %v154
    %168 = vmatprep.subr.bf16.mxu0 0
    %169 = vmatpush1.bf16.msra.mxu0 %v153
    %170 = vmatprep.subr.bf16.mxu0 0
    %171 = vmatpush1.bf16.msra.mxu0 %v152
    %172 = vmatprep.subr.bf16.mxu0 0
    %173 = vmatpush1.bf16.msra.mxu0 %v151
    %174 = vmatprep.subr.bf16.mxu0 0
    %175 = vmatpush1.bf16.msra.mxu0 %v150
    %176 = vmatprep.subr.bf16.mxu0 0
    %177 = vmatpush1.bf16.msra.mxu0 %v149
    %178 = vmatprep.subr.bf16.mxu0 0
    %179 = vmatpush1.bf16.msra.mxu0 %v148
    %180 = vmatprep.subr.bf16.mxu0 0
    %181 = vmatpush2.bf16.msra.mxu0 0
    %182 = vmatprep.subr.bf16.mxu0 0
    %183 = vmatpush2.bf16.msra.mxu0 0
    %184 = vmatprep.subr.bf16.mxu0 0
    %185 = vmatpush2.bf16.msra.mxu0 0
    %186 = vmatprep.subr.bf16.mxu0 0
    %187 = vmatpush2.bf16.msra.mxu0 0
    %188 = vmatprep.subr.bf16.mxu0 0
    %189 = vmatpush2.bf16.msra.mxu0 0
    %190 = vmatprep.subr.bf16.mxu0 0
    %191 = vmatpush2.bf16.msra.mxu0 0
    %192 = vmatprep.subr.bf16.mxu0 0
    %193 = vmatpush2.bf16.msra.mxu0 0
    %194 = vmatprep.subr.bf16.mxu0 0
    %195 = vmatpush2.bf16.msra.mxu0 0
    %196 = vmatprep.mubr.bf16.mxu0 0
    %197 = vmatmul.mubr.bf16.gmra.mxu0 %v94
    %v198 = vpop.f32.mrf.mxu0
    %v199 = vadd.f32 %v115, %v198
    %v200 = vpop.f32.mrf.mxu0
    %v201 = vpop.f32.mrf.mxu0
    %v202 = vpop.f32.mrf.mxu0
    %203 = vdwg.mxu0
    %v204 = vmax.f32 %v199, 0.0
    %v205 = vpack.c.bf16 %v204, %v204
    %v206 = vld [vmem:[#allocation3 + $0x48] sm:$0xf]
    %v207 = vld [vmem:[#allocation3 + $0x4c] sm:$0xf]
    %v208 = vld [vmem:[#allocation3 + $0x50] sm:$0xf]
    %v209 = vld [vmem:[#allocation3 + $0x54] sm:$0xf]
    %v210 = vld [vmem:[#allocation3 + $0x58] sm:$0xf]
    %v211 = vld [vmem:[#allocation3 + $0x5c] sm:$0xf]
    %v212 = vld [vmem:[#allocation3 + $0x60] sm:$0xf]
    %v213 = vld [vmem:[#allocation3 + $0x64] sm:$0xf]
    %v214 = vld [vmem:[#allocation3 + $0x68] sm:$0xf]
    %v215 = vld [vmem:[#allocation3 + $0x6c] sm:$0xf]
    %v216 = vld [vmem:[#allocation3 + $0x70] sm:$0xf]
    %v217 = vld [vmem:[#allocation3 + $0x74] sm:$0xf]
    %v218 = vld [vmem:[#allocation3 + $0x78] sm:$0xf]
    %v219 = vld [vmem:[#allocation3 + $0x7c] sm:$0xf]
    %v220 = vld [vmem:[#allocation3 + $0x80] sm:$0xf]
    %v221 = vld [vmem:[#allocation3 + $0x84] sm:$0xf]
    %v222 = vld [vmem:[%s2 + $0x2] sm:$0x1]
    %v223 = vlaneseq
    %v224 = vshrl.u32 %v223, 7
    %v225 = vsub.s32 0, %v224
    %v226 = vrot.slane %v222, %v225
    %v243 = vunpack.c.l.b16 %v206
    %v244 = vunpack.c.l.b16 %v207
    %v245 = vunpack.c.l.b16 %v208
    %v246 = vunpack.c.l.b16 %v209
    %v247 = vunpack.c.l.b16 %v210
    %v248 = vunpack.c.l.b16 %v211
    %v249 = vunpack.c.l.b16 %v212
    %v250 = vunpack.c.l.b16 %v213
    %v251 = vunpack.c.l.b16 %v214
    %v252 = vunpack.c.l.b16 %v215
    %v253 = vunpack.c.l.b16 %v216
    %v254 = vunpack.c.l.b16 %v217
    %v255 = vunpack.c.l.b16 %v218
    %v256 = vunpack.c.l.b16 %v219
    %v257 = vunpack.c.l.b16 %v220
    %v258 = vunpack.c.l.b16 %v221
    %v259 = vpack.c.b16 %v244, %v243
    %v260 = vpack.c.b16 %v246, %v245
    %v261 = vpack.c.b16 %v248, %v247
    %v262 = vpack.c.b16 %v250, %v249
    %v263 = vpack.c.b16 %v252, %v251
    %v264 = vpack.c.b16 %v254, %v253
    %v265 = vpack.c.b16 %v256, %v255
    %v266 = vpack.c.b16 %v258, %v257
    %275 = vmatprep.subr.bf16.mxu0 0
    %276 = vmatpush1.bf16.msra.mxu0 %v266
    %277 = vmatprep.subr.bf16.mxu0 0
    %278 = vmatpush1.bf16.msra.mxu0 %v265
    %279 = vmatprep.subr.bf16.mxu0 0
    %280 = vmatpush1.bf16.msra.mxu0 %v264
    %281 = vmatprep.subr.bf16.mxu0 0
    %282 = vmatpush1.bf16.msra.mxu0 %v263
    %283 = vmatprep.subr.bf16.mxu0 0
    %284 = vmatpush1.bf16.msra.mxu0 %v262
    %285 = vmatprep.subr.bf16.mxu0 0
    %286 = vmatpush1.bf16.msra.mxu0 %v261
    %287 = vmatprep.subr.bf16.mxu0 0
    %288 = vmatpush1.bf16.msra.mxu0 %v260
    %289 = vmatprep.subr.bf16.mxu0 0
    %290 = vmatpush1.bf16.msra.mxu0 %v259
    %291 = vmatprep.subr.bf16.mxu0 0
    %292 = vmatpush2.bf16.msra.mxu0 0
    %293 = vmatprep.subr.bf16.mxu0 0
    %294 = vmatpush2.bf16.msra.mxu0 0
    %295 = vmatprep.subr.bf16.mxu0 0
    %296 = vmatpush2.bf16.msra.mxu0 0
    %297 = vmatprep.subr.bf16.mxu0 0
    %298 = vmatpush2.bf16.msra.mxu0 0
    %299 = vmatprep.subr.bf16.mxu0 0
    %300 = vmatpush2.bf16.msra.mxu0 0
    %301 = vmatprep.subr.bf16.mxu0 0
    %302 = vmatpush2.bf16.msra.mxu0 0
    %303 = vmatprep.subr.bf16.mxu0 0
    %304 = vmatpush2.bf16.msra.mxu0 0
    %305 = vmatprep.subr.bf16.mxu0 0
    %306 = vmatpush2.bf16.msra.mxu0 0
    %307 = vmatprep.mubr.bf16.mxu0 0
    %308 = vmatmul.mubr.bf16.gmra.mxu0 %v205
    %v309 = vpop.f32.mrf.mxu0
    %v310 = vadd.f32 %v226, %v309
    %v311 = vpop.f32.mrf.mxu0
    %v312 = vpop.f32.mrf.mxu0
    %v313 = vpop.f32.mrf.mxu0
    %314 = vdwg.mxu0
    %315 = vst [vmem:[#allocation6] sm:$0xff] %v310
    // Predicated region
    $region18: #{tpu_custom_call.1} parent=1 // pred_check
      _
    $region19: #{tpu_custom_call.1} parent=1 // pred_check_branch
      %317 = sbr.rel (0) target = $region21
    $region20: #{tpu_custom_call.1} parent=1 // pred_region
      %s319 = ssub.s32 128, 128
      %320 = vsyncadd [#allocation5], %s319
      %s322 = sshll.u32 [#allocation6], 4
      %s323 = int_to_ptr.vmem [resolvable:$true] %s322
      %325 = dma.vmem_to_hbm [thread:$0]  %s323, 128, %s3, [#allocation5]
    $region21: #{tpu_custom_call.1} parent=1 // pred_fallthru
      _
    // Predicated region
    $region22: #{tpu_custom_call.1} parent=1 // pred_check
      _
    $region23: #{tpu_custom_call.1} parent=1 // pred_check_branch
      %327 = sbr.rel (0) target = $region25
    $region24: #{tpu_custom_call.1} parent=1 // pred_region
      %328 = dma.done [#allocation5], 128
    $region25: #{tpu_custom_call.1} parent=1 // pred_fallthru
      _
    %329 = vsyncpa [#allocation4], 1
    %330 = vsyncpa [#allocation5], 1

</llo_original>
